<compile_context>
chip_gen: v5e
topology: v5e:2x2
jax: 0.10.0
libtpu: 0.0.40
codegen_flags: <defaults>
</compile_context>

<pallas_src>
import functools

import jax
import jax.numpy as jnp
from jax.experimental import pallas as pl
from jax.experimental.pallas import tpu as pltpu

_VMEM_LIMIT = 32 * 1024 * 1024


def _round_up(x, m):
    return (x + m - 1) // m * m


def _pick_tile(dim, target, align=128):
    """Largest tile <= target that divides dim and is align-aligned; falls back
    to the full dimension (always legal for BlockSpec)."""
    if dim <= target:
        return dim
    t = (target // align) * align
    while t >= align:
        if dim % t == 0:
            return t
        t -= align
    return dim


# ---------------------------------------------------------------------------
# 1) Generic tiled matmul (QKV projection): bf16 operands, f32 accumulation.
# ---------------------------------------------------------------------------
def _matmul_kernel(x_ref, w_ref, o_ref, acc_ref):
    @pl.when(pl.program_id(2) == 0)
    def _():
        acc_ref[...] = jnp.zeros_like(acc_ref)

    acc_ref[...] += jnp.dot(x_ref[...], w_ref[...],
                            preferred_element_type=jnp.float32)

    @pl.when(pl.program_id(2) == pl.num_programs(2) - 1)
    def _():
        o_ref[...] = acc_ref[...].astype(o_ref.dtype)


def _tiled_matmul(x, w, out_dtype, *, tm, tn, tk):
    M, K = x.shape
    K2, N = w.shape
    assert K == K2 and M % tm == 0 and N % tn == 0 and K % tk == 0
    flops = 2 * M * N * K
    bytes_accessed = int(x.size * x.dtype.itemsize + w.size * w.dtype.itemsize
                         + M * N * jnp.dtype(out_dtype).itemsize)
    return pl.pallas_call(
        _matmul_kernel,
        out_shape=jax.ShapeDtypeStruct((M, N), out_dtype),
        grid_spec=pltpu.PrefetchScalarGridSpec(
            num_scalar_prefetch=0,
            grid=(M // tm, N // tn, K // tk),
            in_specs=[pl.BlockSpec((tm, tk), lambda i, j, k: (i, k)),
                      pl.BlockSpec((tk, tn), lambda i, j, k: (k, j))],
            out_specs=pl.BlockSpec((tm, tn), lambda i, j, k: (i, j)),
            scratch_shapes=[pltpu.VMEM((tm, tn), jnp.float32)]),
        compiler_params=pltpu.CompilerParams(
            dimension_semantics=("parallel", "parallel", "arbitrary"),
            vmem_limit_bytes=_VMEM_LIMIT),
        cost_estimate=pl.CostEstimate(flops=flops, transcendentals=0,
                                      bytes_accessed=bytes_accessed),
    )(x, w)


# ---------------------------------------------------------------------------
# 2) RoPE + head split / layout shuffle.
# ---------------------------------------------------------------------------
def _rope_split_kernel(qkv_ref, cos_ref, sin_ref, q_ref, k_ref, v_ref, *,
                       num_heads, num_kv_heads, head_dim):
    group = num_heads // num_kv_heads
    half = head_dim // 2
    q_size = num_heads * head_dim
    kv_size = num_kv_heads * head_dim

    cos = cos_ref[...]            # [tq, head_dim]  (cos duplicated full width)
    sin = sin_ref[...]            # [tq, head_dim]  (sign folded: [-sin, sin])
    qkv = qkv_ref[...]

    def rotate_half(x):
        # concat(x2, x1): use the XLU roll when the head dim is lane aligned.
        if head_dim % 128 == 0:
            return pltpu.roll(x, shift=half, axis=-1)
        return jnp.concatenate([x[:, half:], x[:, :half]], axis=-1)

    def rope(x):
        xf = x.astype(jnp.float32)
        return (xf * cos + rotate_half(xf) * sin).astype(q_ref.dtype)

    for h in range(num_heads):                       # static unroll (no matmul)
        q_ref[h // group, h % group, :, :] = rope(
            qkv[:, h * head_dim:(h + 1) * head_dim])
    for h in range(num_kv_heads):                    # K rope applied ONCE/head
        kb = q_size + h * head_dim
        vb = q_size + kv_size + h * head_dim
        k_ref[h, :, :] = rope(qkv[:, kb:kb + head_dim])
        v_ref[h, :, :] = qkv[:, vb:vb + head_dim].astype(v_ref.dtype)


def _rope_split(qkv, cos_f, sin_s, *, num_heads, num_kv_heads, head_dim, tq):
    T_pad, qkv_w = qkv.shape
    group = num_heads // num_kv_heads
    kernel = functools.partial(_rope_split_kernel, num_heads=num_heads,
                               num_kv_heads=num_kv_heads, head_dim=head_dim)
    dt = qkv.dtype
    return pl.pallas_call(
        kernel,
        out_shape=(
            jax.ShapeDtypeStruct((num_kv_heads, group, T_pad, head_dim), dt),
            jax.ShapeDtypeStruct((num_kv_heads, T_pad, head_dim), dt),
            jax.ShapeDtypeStruct((num_kv_heads, T_pad, head_dim), dt),
        ),
        grid_spec=pltpu.PrefetchScalarGridSpec(
            num_scalar_prefetch=0,
            grid=(T_pad // tq,),
            in_specs=[pl.BlockSpec((tq, qkv_w), lambda i: (i, 0)),
                      pl.BlockSpec((tq, head_dim), lambda i: (i, 0)),
                      pl.BlockSpec((tq, head_dim), lambda i: (i, 0))],
            out_specs=(
                pl.BlockSpec((num_kv_heads, group, tq, head_dim),
                             lambda i: (0, 0, i, 0)),
                pl.BlockSpec((num_kv_heads, tq, head_dim), lambda i: (0, i, 0)),
                pl.BlockSpec((num_kv_heads, tq, head_dim), lambda i: (0, i, 0)),
            )),
        compiler_params=pltpu.CompilerParams(
            dimension_semantics=("parallel",),
            vmem_limit_bytes=_VMEM_LIMIT),
    )(qkv, cos_f, sin_s)


# ---------------------------------------------------------------------------
# 3) Flash attention with online softmax; GQA group folded into the M dim.
# ---------------------------------------------------------------------------
def _flash_attn_kernel(q_ref, k_ref, v_ref, o_ref, m_s, l_s, acc_s, *,
                       tq, group, head_dim, scaling):
    qi = pl.program_id(1)
    ki = pl.program_id(2)
    M = group * tq

    @pl.when(ki == 0)
    def _():
        m_s[...] = jnp.full_like(m_s, -1e30)       # finite big-neg (no NaN risk)
        l_s[...] = jnp.zeros_like(l_s)
        acc_s[...] = jnp.zeros_like(acc_s)

    def attend(on_diagonal):
        q = q_ref[0].reshape(M, head_dim)          # [group*tq, hd]  bf16
        k = k_ref[0]                               # [tk, hd]        bf16
        v = v_ref[0]
        s = jax.lax.dot_general(q, k, (((1,), (1,)), ((), ())),
                                preferred_element_type=jnp.float32) * scaling
        if on_diagonal:
            # Causal mask only needed on diagonal tiles; rows are (g, t) packed.
            row = jax.lax.broadcasted_iota(jnp.int32, s.shape, 0) % tq
            col = jax.lax.broadcasted_iota(jnp.int32, s.shape, 1)
            s = jnp.where(col <= row, s, -1e30)
        m_prev = m_s[...]
        m_new = jnp.maximum(m_prev, jnp.max(s, axis=-1, keepdims=True))
        alpha = jnp.exp(m_prev - m_new)
        p = jnp.exp(s - m_new)
        l_s[...] = alpha * l_s[...] + jnp.sum(p, axis=-1, keepdims=True)
        acc_s[...] = alpha * acc_s[...] + jnp.dot(
            p.astype(v.dtype), v, preferred_element_type=jnp.float32)
        m_s[...] = m_new

    @pl.when(ki < qi)            # strictly below diagonal: no mask needed
    def _():
        attend(False)

    @pl.when(ki == qi)           # diagonal tile: masked
    def _():
        attend(True)

    # ki > qi: fully masked -> skipped entirely (and its K/V DMA is elided by
    # the clamped index map below).

    @pl.when(ki == pl.num_programs(2) - 1)
    def _():
        inv_l = pl.reciprocal(l_s[...], approx=True)      # EUP, off VALU path
        o = (acc_s[...] * inv_l).astype(o_ref.dtype)
        o_ref[0] = o.reshape(group, tq, head_dim)


def _flash_attention(q_r, k_r, v_r, *, tq, scaling):
    nkv, group, T_pad, head_dim = q_r.shape
    assert T_pad % tq == 0
    nq = T_pad // tq
    M = group * tq
    num_heads = nkv * group
    kernel = functools.partial(_flash_attn_kernel, tq=tq, group=group,
                               head_dim=head_dim, scaling=scaling)
    flops = 4 * num_heads * T_pad * T_pad * head_dim
    bytes_accessed = int(2 * (2 * q_r.size + k_r.size + v_r.size))
    return pl.pallas_call(
        kernel,
        out_shape=jax.ShapeDtypeStruct(q_r.shape, q_r.dtype),
        grid_spec=pltpu.PrefetchScalarGridSpec(
            num_scalar_prefetch=0,
            grid=(nkv, nq, nq),
            in_specs=[
                pl.BlockSpec((1, group, tq, head_dim),
                             lambda h, qi, ki: (h, 0, qi, 0)),
                # Clamp kv block index to the diagonal so fully-masked tiles
                # re-use the already-resident block (no wasted DMA).
                pl.BlockSpec((1, tq, head_dim),
                             lambda h, qi, ki: (h, jnp.minimum(ki, qi), 0)),
                pl.BlockSpec((1, tq, head_dim),
                             lambda h, qi, ki: (h, jnp.minimum(ki, qi), 0)),
            ],
            out_specs=pl.BlockSpec((1, group, tq, head_dim),
                                   lambda h, qi, ki: (h, 0, qi, 0)),
            scratch_shapes=[pltpu.VMEM((M, 1), jnp.float32),
                            pltpu.VMEM((M, 1), jnp.float32),
                            pltpu.VMEM((M, head_dim), jnp.float32)]),
        compiler_params=pltpu.CompilerParams(
            dimension_semantics=("parallel", "parallel", "arbitrary"),
            vmem_limit_bytes=_VMEM_LIMIT),
        cost_estimate=pl.CostEstimate(
            flops=flops,
            transcendentals=num_heads * T_pad * T_pad,
            bytes_accessed=bytes_accessed),
    )(q_r, k_r, v_r)


# ---------------------------------------------------------------------------
# 4) Output projection contracting over (kv_head, group, head_dim).
# ---------------------------------------------------------------------------
def _oproj_kernel(o_ref, w_ref, out_ref, acc_ref, *, group):
    c = pl.program_id(2)

    @pl.when(c == 0)
    def _():
        acc_ref[...] = jnp.zeros_like(acc_ref)

    for g in range(group):
        acc_ref[...] += jnp.dot(o_ref[0, g], w_ref[0, g],
                                preferred_element_type=jnp.float32)

    @pl.when(c == pl.num_programs(2) - 1)
    def _():
        out_ref[...] = acc_ref[...].astype(out_ref.dtype)


def _o_projection(o_r, w_or, out_dtype, *, tm, tn):
    nkv, group, T_pad, head_dim = o_r.shape
    hidden = w_or.shape[-1]
    assert T_pad % tm == 0 and hidden % tn == 0
    kernel = functools.partial(_oproj_kernel, group=group)
    flops = 2 * T_pad * hidden * nkv * group * head_dim
    return pl.pallas_call(
        kernel,
        out_shape=jax.ShapeDtypeStruct((T_pad, hidden), out_dtype),
        grid_spec=pltpu.PrefetchScalarGridSpec(
            num_scalar_prefetch=0,
            grid=(T_pad // tm, hidden // tn, nkv),
            in_specs=[
                pl.BlockSpec((1, group, tm, head_dim),
                             lambda i, j, c: (c, 0, i, 0)),
                pl.BlockSpec((1, group, head_dim, tn),
                             lambda i, j, c: (c, 0, 0, j)),
            ],
            out_specs=pl.BlockSpec((tm, tn), lambda i, j, c: (i, j)),
            scratch_shapes=[pltpu.VMEM((tm, tn), jnp.float32)]),
        compiler_params=pltpu.CompilerParams(
            dimension_semantics=("parallel", "parallel", "arbitrary"),
            vmem_limit_bytes=_VMEM_LIMIT),
        cost_estimate=pl.CostEstimate(
            flops=flops, transcendentals=0,
            bytes_accessed=int(2 * (o_r.size + w_or.size) + 4 * T_pad * hidden)),
    )(o_r, w_or)


# ---------------------------------------------------------------------------
# Wrapper (weight prep hoisted out of the per-call path).
# ---------------------------------------------------------------------------
def prepare_llama31_attention_weights(w_qkv, w_o, *, num_heads, num_kv_heads,
                                      head_dim):
    """One-time weight prep: transpose to x@W form, bf16 cast, reshape wo so the
    O projection consumes the [kv_head, group, T, hd] attention output with no
    transpose."""
    hidden = w_qkv.shape[1]
    group = num_heads // num_kv_heads
    wqkv_t = jnp.asarray(w_qkv.T, dtype=jnp.bfloat16)          # [H, q+2kv]
    wo_t = jnp.asarray(w_o.T, dtype=jnp.bfloat16)              # [q_size, H]
    wo_r = wo_t.reshape(num_kv_heads, group, head_dim, hidden)
    return wqkv_t, wo_r


def llama31_attention(hidden_states, positions, wqkv_t, wo_r, *,
                      num_heads, num_kv_heads, head_dim,
                      rope_theta=10000.0,
                      q_tile=256, k_tile_hidden=512, n_tile=256):
    """hidden_states: [T, H] f32; positions: [T] int32.
    wqkv_t: [H, q+2kv] bf16 (pre-transposed); wo_r: [nkv, group, hd, H] bf16."""
    T, hidden = hidden_states.shape
    assert num_heads % num_kv_heads == 0
    group = num_heads // num_kv_heads
    q_size = num_heads * head_dim
    kv_size = num_kv_heads * head_dim
    qkv_dim = q_size + 2 * kv_size
    assert wqkv_t.shape == (hidden, qkv_dim)
    scaling = head_dim ** -0.5

    # Tile sizes (adapt down for tiny demo shapes; 256-ish for real models).
    tq = min(q_tile, _round_up(T, 8))
    T_pad = _round_up(T, tq)
    tk_h = _pick_tile(hidden, k_tile_hidden)     # contraction tile over hidden
    tn_qkv = _pick_tile(qkv_dim, n_tile)
    tn_out = _pick_tile(hidden, n_tile)

    x = hidden_states.astype(jnp.bfloat16)
    if T_pad != T:
        x = jnp.pad(x, ((0, T_pad - T), (0, 0)))
        positions = jnp.pad(positions, (0, T_pad - T))

    # RoPE tables: full head_dim width, sign folded into sin (neox style).
    inv_freq = 1.0 / (rope_theta ** (
        jnp.arange(0, head_dim, 2, dtype=jnp.float32) / head_dim))
    freqs = positions.astype(jnp.float32)[:, None] * inv_freq[None, :]
    cos = jnp.cos(freqs)
    sin = jnp.sin(freqs)
    cos_f = jnp.concatenate([cos, cos], axis=-1)          # [T_pad, head_dim]
    sin_s = jnp.concatenate([-sin, sin], axis=-1)

    # 1) QKV projection.
    qkv = _tiled_matmul(x, wqkv_t, jnp.bfloat16, tm=tq, tn=tn_qkv, tk=tk_h)
    # 2) RoPE + head split / GQA layout.
    q_r, k_r, v_r = _rope_split(qkv, cos_f, sin_s, num_heads=num_heads,
                                num_kv_heads=num_kv_heads, head_dim=head_dim,
                                tq=tq)
    # 3) Flash attention (online softmax, causal).
    o_r = _flash_attention(q_r, k_r, v_r, tq=tq, scaling=scaling)
    # 4) Output projection.
    out = _o_projection(o_r, wo_r, jnp.float32, tm=tq, tn=tn_out)
    return out[:T]


# ---------------------------------------------------------------------------
# Pure-JAX reference (f32).
# ---------------------------------------------------------------------------
def _reference(hidden_states, positions, w_qkv, w_o, *,
               num_heads, num_kv_heads, head_dim, rope_theta=10000.0):
    T, H = hidden_states.shape
    q_size = num_heads * head_dim
    kv_size = num_kv_heads * head_dim
    half = head_dim // 2
    group = num_heads // num_kv_heads
    scaling = head_dim ** -0.5

    inv_freq = 1.0 / (rope_theta ** (
        jnp.arange(0, head_dim, 2, dtype=jnp.float32) / head_dim))
    freqs = positions.astype(jnp.float32)[:, None] * inv_freq[None, :]
    cos, sin = jnp.cos(freqs), jnp.sin(freqs)

    qkv = hidden_states @ w_qkv.T
    q = qkv[:, :q_size].reshape(T, num_heads, head_dim)
    k = qkv[:, q_size:q_size + kv_size].reshape(T, num_kv_heads, head_dim)
    v = qkv[:, q_size + kv_size:].reshape(T, num_kv_heads, head_dim)

    def rope(x):
        x1, x2 = x[..., :half], x[..., half:]
        return jnp.concatenate([x1 * cos[:, None, :] - x2 * sin[:, None, :],
                                x2 * cos[:, None, :] + x1 * sin[:, None, :]],
                               axis=-1)

    q, k = rope(q), rope(k)
    k = jnp.repeat(k, group, axis=1)
    v = jnp.repeat(v, group, axis=1)
    s = jnp.einsum("thd,shd->hts", q, k) * scaling
    mask = jnp.tril(jnp.ones((T, T), dtype=bool))
    s = jnp.where(mask[None], s, -jnp.inf)
    p = jax.nn.softmax(s, axis=-1)
    o = jnp.einsum("hts,shd->thd", p, v).reshape(T, q_size)
    return o @ w_o.T


if __name__ == "__main__":
    # Small config consistent with the module: hidden=32, 4 heads, 2 kv heads.
    hidden_size = 32
    num_heads = 4
    num_kv_heads = 2
    head_dim = hidden_size // num_heads        # 8
    T = 8

    q_size = num_heads * head_dim
    kv_size = num_kv_heads * head_dim

    key = jax.random.PRNGKey(0)
    k1, k2, k3 = jax.random.split(key, 3)
    hidden_states = jax.random.normal(k1, (T, hidden_size), dtype=jnp.float32)
    w_qkv = 0.05 * jax.random.normal(
        k2, (q_size + 2 * kv_size, hidden_size), dtype=jnp.float32)
    w_o = 0.05 * jax.random.normal(
        k3, (hidden_size, q_size), dtype=jnp.float32)
    positions = jnp.arange(T, dtype=jnp.int32)

    # One-time weight prep (hoisted out of the per-call path).
    wqkv_t, wo_r = prepare_llama31_attention_weights(
        w_qkv, w_o, num_heads=num_heads, num_kv_heads=num_kv_heads,
        head_dim=head_dim)

    out = llama31_attention(hidden_states, positions, wqkv_t, wo_r,
                            num_heads=num_heads, num_kv_heads=num_kv_heads,
                            head_dim=head_dim)
    out = jax.block_until_ready(out)

    ref = _reference(hidden_states, positions, w_qkv, w_o,
                     num_heads=num_heads, num_kv_heads=num_kv_heads,
                     head_dim=head_dim)
    assert out.shape == (T, hidden_size)
    max_err = float(jnp.max(jnp.abs(out - ref)))
    assert jnp.allclose(out, ref, atol=2e-2, rtol=2e-2), (
        f"mismatch vs reference, max abs err={max_err}")
    # TODO(synk): rope_scaling (llama3 long-context frequency scaling), KV-cache
    # decode path, and tensor-parallel all-reduce are not modeled (prefill,
    # rope_scaling=None, tp_size=1 only).
    print("KERNEL_OK")
</pallas_src>

<mosaic_0001>
module attributes {stable_mosaic.version = 11 : i64} {
  func.func @_matmul_kernel(%arg0: i32, %arg1: i32, %arg2: i32, %arg3: memref<8x32xbf16, #tpu.memory_space<vmem>>, %arg4: memref<32x64xbf16, #tpu.memory_space<vmem>>, %arg5: memref<8x64xbf16, #tpu.memory_space<vmem>>, %arg6: memref<8x64xf32, #tpu.memory_space<vmem>>) attributes {dimension_semantics = [#tpu.dimension_semantics<parallel>, #tpu.dimension_semantics<parallel>, #tpu.dimension_semantics<arbitrary>], iteration_bounds = array<i64: 1, 1, 1>, scalar_prefetch = 0 : i64, scratch_operands = 1 : i64, tpu.core_type = #tpu.core_type<tc>, window_params = [{transform_indices = @transform_0, window_bounds = array<i64: 8, 32>}, {transform_indices = @transform_1, window_bounds = array<i64: 32, 64>}, {transform_indices = @transform_2, window_bounds = array<i64: 8, 64>}]} {
    %c0_i32 = arith.constant 0 : i32
    %0 = arith.cmpi eq, %arg2, %c0_i32 : i32
    %1 = arith.extui %0 : i1 to i32
    %c0_i32_0 = arith.constant 0 : i32
    %2 = arith.cmpi ne, %1, %c0_i32_0 : i32
    scf.if %2 {
      %cst_10 = arith.constant 0.000000e+00 : f32
      %12 = vector.broadcast %cst_10 : f32 to vector<8x64xf32>
      %c0_11 = arith.constant 0 : index
      %c0_12 = arith.constant 0 : index
      %13 = vector.load %arg6[%c0_11, %c0_12] : memref<8x64xf32, #tpu.memory_space<vmem>>, vector<8x64xf32>
      tpu.vector_store %arg6[%c0_11, %c0_12], %12 {strides = array<i32>} : memref<8x64xf32, #tpu.memory_space<vmem>>, vector<8x64xf32>,
    } else {
    }
    %c0 = arith.constant 0 : index
    %c0_1 = arith.constant 0 : index
    %3 = vector.load %arg6[%c0, %c0_1] : memref<8x64xf32, #tpu.memory_space<vmem>>, vector<8x64xf32>
    %c0_2 = arith.constant 0 : index
    %c0_3 = arith.constant 0 : index
    %4 = vector.load %arg3[%c0_2, %c0_3] : memref<8x32xbf16, #tpu.memory_space<vmem>>, vector<8x32xbf16>
    %c0_4 = arith.constant 0 : index
    %c0_5 = arith.constant 0 : index
    %5 = vector.load %arg4[%c0_4, %c0_5] : memref<32x64xbf16, #tpu.memory_space<vmem>>, vector<32x64xbf16>
    %cst = arith.constant dense<0.000000e+00> : vector<8x64xf32>
    %6 = tpu.matmul %4, %5, %cst {dimension_numbers = #tpu.dot_dimension_numbers<[1], [0], [0], [1], [0, 0, 1, 1], [], []>} : vector<8x32xbf16>, vector<32x64xbf16>, vector<8x64xf32> -> vector<8x64xf32>
    %7 = arith.addf %3, %6 : vector<8x64xf32>
    %c0_6 = arith.constant 0 : index
    %c0_7 = arith.constant 0 : index
    %8 = vector.load %arg6[%c0_6, %c0_7] : memref<8x64xf32, #tpu.memory_space<vmem>>, vector<8x64xf32>
    tpu.vector_store %arg6[%c0_6, %c0_7], %7 {strides = array<i32>} : memref<8x64xf32, #tpu.memory_space<vmem>>, vector<8x64xf32>,
    %c0_i32_8 = arith.constant 0 : i32
    %9 = arith.cmpi eq, %arg2, %c0_i32_8 : i32
    %10 = arith.extui %9 : i1 to i32
    %c0_i32_9 = arith.constant 0 : i32
    %11 = arith.cmpi ne, %10, %c0_i32_9 : i32
    scf.if %11 {
      %c0_10 = arith.constant 0 : index
      %c0_11 = arith.constant 0 : index
      %12 = vector.load %arg6[%c0_10, %c0_11] : memref<8x64xf32, #tpu.memory_space<vmem>>, vector<8x64xf32>
      %13 = arith.truncf %12 : vector<8x64xf32> to vector<8x64xbf16>
      %c0_12 = arith.constant 0 : index
      %c0_13 = arith.constant 0 : index
      %14 = vector.load %arg5[%c0_12, %c0_13] : memref<8x64xbf16, #tpu.memory_space<vmem>>, vector<8x64xbf16>
      tpu.vector_store %arg5[%c0_12, %c0_13], %13 {strides = array<i32>} : memref<8x64xbf16, #tpu.memory_space<vmem>>, vector<8x64xbf16>,
    } else {
    }
    return
  }
  func.func @transform_0(%arg0: i32, %arg1: i32, %arg2: i32) -> (i32, i32) {
    %c0_i32 = arith.constant 0 : i32
    return %arg0, %arg2 : i32, i32
  }
  func.func @transform_1(%arg0: i32, %arg1: i32, %arg2: i32) -> (i32, i32) {
    %c0_i32 = arith.constant 0 : i32
    return %arg2, %arg1 : i32, i32
  }
  func.func @transform_2(%arg0: i32, %arg1: i32, %arg2: i32) -> (i32, i32) {
    %c0_i32 = arith.constant 0 : i32
    return %arg0, %arg1 : i32, i32
  }
}

</mosaic_0001>

<llo_original>
// kernel: tpu_custom_call.1
$region0: #{tpu_custom_call.1}
  #allocation0 [shape = 'u32[]', space=smem, size = 0x4, offset = 0x4, fixed_abs, tag = 'smem constant byte address 0x4 - core index']
  #allocation1 [shape = 'u32[72,128]{1,0:T(1,128)}', space=vmem, size = 0x9000, scoped, tag = 'internal scratch']
  #allocation2 [shape = 'f32[8,64]{1,0:T(8,128)}', space=vmem, size = 0x1000, scoped, tag = 'scratch operand']
  %s0 = inlined_call_operand.hbm [shape: bf16[8,32], index: 0, kind: input, shape index: {}]
  %s1 = inlined_call_operand.hbm [shape: bf16[32,64], index: 1, kind: input, shape index: {}]
  %s2 = inlined_call_operand.hbm [shape: bf16[8,64], index: 2, kind: output, shape index: {}]
  %s3 = sld [smem:[#allocation0]]
  $region34: #{tpu_custom_call.1} parent=0
    _
  %s5 = ssub.s32 1, %s3
  %s6 = scalar_select 0, %s5, %s3
  $region1: #{tpu_custom_call.1} parent=0
    #allocation3 [shape = 'u8[2048]{0}', space=vmem, size = 0x800, scoped, tag = 'input window, operand 0, single buffered']
    #allocation4 [shape = 's32[1]{0}', space=sflag, size = 0x4, scoped, tag = 'scoped memory for tpu_custom_call.1']
    #allocation5 [shape = 's32[1]{0}', space=sflag, size = 0x4, scoped, tag = 'scoped memory for tpu_custom_call.1']
    #allocation6 [shape = 'u8[8192]{0}', space=vmem, size = 0x2000, scoped, tag = 'input window, operand 1, single buffered']
    #allocation7 [shape = 's32[1]{0}', space=sflag, size = 0x4, scoped, tag = 'scoped memory for tpu_custom_call.1']
    #allocation8 [shape = 'u8[2048]{0}', space=vmem, size = 0x800, scoped, tag = 'output window, operand 0, single buffered']
    %7 = vsyncpa [#allocation4], 0
    %8 = vsyncpa [#allocation7], 0
    %9 = vsyncpa [#allocation5], 0
    // Predicated region
    $region2: #{tpu_custom_call.1} parent=1 // pred_check
      _
    $region3: #{tpu_custom_call.1} parent=1 // pred_check_branch
      %11 = sbr.rel (0) target = $region5
    $region4: #{tpu_custom_call.1} parent=1 // pred_region
      %13 = vsyncadd [#allocation4], 0
      %s15 = sshll.u32 %s0, 4
      %s16 = int_to_ptr.hbm [resolvable:$true] %s15
      %s17 = sshll.u32 [#allocation3], 4
      %s18 = int_to_ptr.vmem [resolvable:$true] %s17
      %20 = dma.hbm_to_vmem [thread:$0]  %s16, 64, %s18, [#allocation4]
    $region5: #{tpu_custom_call.1} parent=1 // pred_fallthru
      _
    // Predicated region
    $region6: #{tpu_custom_call.1} parent=1 // pred_check
      _
    $region7: #{tpu_custom_call.1} parent=1 // pred_check_branch
      %22 = sbr.rel (0) target = $region9
    $region8: #{tpu_custom_call.1} parent=1 // pred_region
      %24 = vsyncadd [#allocation7], 0
      %s25 = sshll.u32 %s1, 4
      %s26 = int_to_ptr.hbm [resolvable:$true] %s25
      %s27 = sshll.u32 [#allocation6], 4
      %s28 = int_to_ptr.vmem [resolvable:$true] %s27
      %33 = dma.hbm_to_vmem [thread:$0]  %s26, 256, %s28, [#allocation7], 64, 64, 4
    $region9: #{tpu_custom_call.1} parent=1 // pred_fallthru
      _
    // Predicated region
    $region10: #{tpu_custom_call.1} parent=1 // pred_check
      _
    $region11: #{tpu_custom_call.1} parent=1 // pred_check_branch
      %35 = sbr.rel (0) target = $region13
    $region12: #{tpu_custom_call.1} parent=1 // pred_region
      %37 = dma.done [#allocation4], 64
    $region13: #{tpu_custom_call.1} parent=1 // pred_fallthru
      _
    // Predicated region
    $region14: #{tpu_custom_call.1} parent=1 // pred_check
      _
    $region15: #{tpu_custom_call.1} parent=1 // pred_check_branch
      %39 = sbr.rel (0) target = $region17
    $region16: #{tpu_custom_call.1} parent=1 // pred_region
      %41 = dma.done [#allocation7], 256
    $region17: #{tpu_custom_call.1} parent=1 // pred_fallthru
      _
    %p43 = scmp.eq.s32.totalorder 0, 0
    // Predicated region
    $region18: #{tpu_custom_call.1} parent=1 // pred_check
      %p44 = pneg %p43
    $region19: #{tpu_custom_call.1} parent=1 // pred_check_branch
      %46 = sbr.rel (%p44) target = $region21
    $region20: #{tpu_custom_call.1} parent=1 // pred_region
      %vm47 = vcmask 523264
      %48 = vst.msk [vmem:[#allocation2] sm:$0xff] %vm47, 0.0
    $region21: #{tpu_custom_call.1} parent=1 // pred_fallthru
      _
    %v49 = vld [vmem:[#allocation2] sm:$0xff]
    %v50 = vld [vmem:[#allocation3] sm:$0xf]
    %v51 = vld [vmem:[#allocation6] sm:$0xf]
    %v52 = vld [vmem:[#allocation6 + $0x4] sm:$0xf]
    %v53 = vld [vmem:[#allocation6 + $0x8] sm:$0xf]
    %v54 = vld [vmem:[#allocation6 + $0xc] sm:$0xf]
    %v59 = vunpack.c.l.b16 %v51
    %v60 = vunpack.c.l.b16 %v52
    %v61 = vunpack.c.l.b16 %v53
    %v62 = vunpack.c.l.b16 %v54
    %v63 = vpack.c.b16 %v60, %v59
    %v64 = vpack.c.b16 %v62, %v61
    %vm67 = vcmask 261120
    %v69 = vsel %vm67, %v50, 0
    %71 = vmatpush.bf16.msra.mxu0 0
    %72 = vmatpush.bf16.msra.mxu0 0
    %73 = vmatpush.bf16.msra.mxu0 0
    %74 = vmatpush.bf16.msra.mxu0 0
    %75 = vmatpush.bf16.msra.mxu0 0
    %76 = vmatpush.bf16.msra.mxu0 0
    %77 = vmatpush.bf16.msra.mxu0 %v64
    %78 = vmatpush.bf16.msra.mxu0 %v63
    %79 = vmatmul.bf16.gmra.mxu0 %v69
    %v80 = vpop.f32.mrf.mxu0
    %v81 = vadd.f32 0.0, %v80
    %v82 = vpop.f32.mrf.mxu0
    %83 = vdwg.mxu0
    %v84 = vadd.f32 %v49, %v81
    %vm85 = vcmask 523264
    %86 = vst.msk [vmem:[#allocation2] sm:$0xff] %vm85, %v84
    // Predicated region
    $region22: #{tpu_custom_call.1} parent=1 // pred_check
      %p87 = pneg %p43
    $region23: #{tpu_custom_call.1} parent=1 // pred_check_branch
      %89 = sbr.rel (%p87) target = $region25
    $region24: #{tpu_custom_call.1} parent=1 // pred_region
      %v90 = vld [vmem:[#allocation2] sm:$0xff]
      %v91 = vpack.c.bf16 %v90, %v90
      %vm92 = vcmask 519168
      %93 = vst.msk [vmem:[#allocation8] sm:$0xf] %vm92, %v91
    $region25: #{tpu_custom_call.1} parent=1 // pred_fallthru
      _
    // Predicated region
    $region26: #{tpu_custom_call.1} parent=1 // pred_check
      _
    $region27: #{tpu_custom_call.1} parent=1 // pred_check_branch
      %95 = sbr.rel (0) target = $region29
    $region28: #{tpu_custom_call.1} parent=1 // pred_region
      %97 = vsyncadd [#allocation5], 0
      %s99 = sshll.u32 [#allocation8], 4
      %s100 = int_to_ptr.vmem [resolvable:$true] %s99
      %s101 = sshll.u32 %s2, 4
      %s102 = int_to_ptr.hbm [resolvable:$true] %s101
      %104 = dma.vmem_to_hbm [thread:$0]  %s100, 64, %s102, [#allocation5]
    $region29: #{tpu_custom_call.1} parent=1 // pred_fallthru
      _
    // Predicated region
    $region30: #{tpu_custom_call.1} parent=1 // pred_check
      _
    $region31: #{tpu_custom_call.1} parent=1 // pred_check_branch
      %106 = sbr.rel (0) target = $region33
    $region32: #{tpu_custom_call.1} parent=1 // pred_region
      %108 = dma.done [#allocation5], 64
    $region33: #{tpu_custom_call.1} parent=1 // pred_fallthru
      _
    %109 = vsyncpa [#allocation4], 1
    %110 = vsyncpa [#allocation7], 1
    %111 = vsyncpa [#allocation5], 1

</llo_original>
